<compile_context>
chip_gen: v7x
topology: tpu7x:2x2x1
jax: 0.10.0
libtpu: 0.0.40
codegen_flags: <defaults>
</compile_context>

<pallas_src>
import jax
import jax.numpy as jnp
from jax.experimental import pallas as pl
from jax.experimental.pallas import tpu as pltpu


def conv2d_1x1_pad1(x_nchw, weight, bias):
    """Equivalent of nn.Conv2d(Cin, Cout, kernel_size=1, stride=1, padding=1).

    x_nchw: (N, Cin, H, W) float32
    weight: (Cout, Cin, 1, 1) float32
    bias:   (Cout,) float32
    returns (N, Cout, H+2, W+2) float32
    """
    N, Cin, H, W = x_nchw.shape
    Cout = weight.shape[0]
    Hp, Wp = H + 2, W + 2

    # Split output channels into 2 blocks when possible -> even parallel grid
    # (both v7x TensorCores busy); otherwise a single block.
    n_cblk = 2 if (Cout % 2 == 0) else 1
    cob = Cout // n_cblk

    # Only remaining wrapper op: spatial zero-pad (padding=1). Border pixels
    # then come out as bias-only automatically, and every kernel block is a
    # full-dim, fully aligned plane.
    xp = jnp.pad(x_nchw, ((0, 0), (0, 0), (1, 1), (1, 1))).astype(jnp.float32)
    w2 = weight.reshape(Cout, Cin).astype(jnp.float32)   # (Cout, Cin) scalars
    b1 = bias.astype(jnp.float32)                        # (Cout,) scalars

    def kernel(w_ref, b_ref, x_ref, o_ref):
        # w_ref: (Cout, Cin) SMEM, b_ref: (Cout,) SMEM,
        # x_ref: (Cin, Hp, Wp) VMEM, o_ref: (cob, Hp, Wp) VMEM.
        base = pl.program_id(1) * cob
        planes = [x_ref[c] for c in range(Cin)]      # aligned (Hp, Wp) loads
        for j in range(cob):                         # static unroll (4)
            oc = base + j
            acc = planes[0] * w_ref[oc, 0] + b_ref[oc]
            for c in range(1, Cin):                  # static unroll (2)
                acc = acc + planes[c] * w_ref[oc, c]
            o_ref[j] = acc                           # aligned full-plane store

    out = pl.pallas_call(
        kernel,
        out_shape=jax.ShapeDtypeStruct((N, Cout, Hp, Wp), jnp.float32),
        grid=(N, n_cblk),
        in_specs=[
            pl.BlockSpec(memory_space=pltpu.MemorySpace.SMEM),   # weights
            pl.BlockSpec(memory_space=pltpu.MemorySpace.SMEM),   # bias
            # Full padded image per batch element; constant across the
            # channel-block axis so it is only DMA'd once per core.
            pl.BlockSpec((None, Cin, Hp, Wp), lambda n, ob: (n, 0, 0, 0)),
        ],
        out_specs=pl.BlockSpec((None, cob, Hp, Wp),
                               lambda n, ob: (n, ob, 0, 0)),
        compiler_params=pltpu.CompilerParams(
            dimension_semantics=("parallel", "parallel")),
    )(w2, b1, xp)
    return out


def model_forward(x1, weight, bias):
    v1 = conv2d_1x1_pad1(x1, weight, bias)
    # v2 = 'str'; if v2: v3 = v1 - 3.5   -> dead code (v3 unused); return v1
    return v1


if __name__ == "__main__":
    key = jax.random.PRNGKey(0)
    kx, kw, kb = jax.random.split(key, 3)

    # Shapes implied by the module: Conv2d(3, 8, 1, padding=1) on (1, 3, 64, 64).
    N, Cin, H, W = 1, 3, 64, 64
    Cout = 8

    x1 = jax.random.normal(kx, (N, Cin, H, W), dtype=jnp.float32)
    weight = jax.random.normal(kw, (Cout, Cin, 1, 1), dtype=jnp.float32) * 0.1
    bias = jax.random.normal(kb, (Cout,), dtype=jnp.float32) * 0.1

    fwd = jax.jit(model_forward)
    out = jax.block_until_ready(fwd(x1, weight, bias))

    # Sanity check against a plain-JAX reference of the same conv.
    xpad = jnp.pad(x1, ((0, 0), (0, 0), (1, 1), (1, 1)))
    ref = jnp.einsum("nchw,oc->nohw", xpad, weight.reshape(Cout, Cin)) + bias[
        None, :, None, None
    ]
    assert out.shape == (N, Cout, H + 2, W + 2)
    assert jnp.allclose(out, ref, atol=1e-5, rtol=1e-5)

    print("KERNEL_OK")
</pallas_src>

<mosaic_0001>
module attributes {stable_mosaic.version = 11 : i64} {
  func.func @kernel(%arg0: i32, %arg1: i32, %arg2: memref<8x3xf32, #tpu.memory_space<smem>>, %arg3: memref<8xf32, #tpu.memory_space<smem>>, %arg4: memref<1x3x66x66xf32, #tpu.memory_space<vmem>>, %arg5: memref<1x4x66x66xf32, #tpu.memory_space<vmem>>) attributes {dimension_semantics = [#tpu.dimension_semantics<parallel>, #tpu.dimension_semantics<parallel>], iteration_bounds = array<i64: 1, 2>, scalar_prefetch = 0 : i64, scratch_operands = 0 : i64, tpu.core_type = #tpu.core_type<tc>, window_params = [{transform_indices = @transform_0, window_bounds = array<i64: 8, 3>}, {transform_indices = @transform_1, window_bounds = array<i64: 8>}, {transform_indices = @transform_2, window_bounds = array<i64: 1, 3, 66, 66>}, {transform_indices = @transform_3, window_bounds = array<i64: 1, 4, 66, 66>}]} {
    %c4_i32 = arith.constant 4 : i32
    %0 = arith.muli %arg1, %c4_i32 : i32
    %c0 = arith.constant 0 : index
    %c0_0 = arith.constant 0 : index
    %c0_1 = arith.constant 0 : index
    %c0_2 = arith.constant 0 : index
    %1 = vector.load %arg4[%c0, %c0_0, %c0_1, %c0_2] : memref<1x3x66x66xf32, #tpu.memory_space<vmem>>, vector<1x1x66x66xf32>
    %2 = vector.shape_cast %1 : vector<1x1x66x66xf32> to vector<66x66xf32>
    %c0_3 = arith.constant 0 : index
    %c1 = arith.constant 1 : index
    %c0_4 = arith.constant 0 : index
    %c0_5 = arith.constant 0 : index
    %3 = vector.load %arg4[%c0_3, %c1, %c0_4, %c0_5] : memref<1x3x66x66xf32, #tpu.memory_space<vmem>>, vector<1x1x66x66xf32>
    %4 = vector.shape_cast %3 : vector<1x1x66x66xf32> to vector<66x66xf32>
    %c0_6 = arith.constant 0 : index
    %c2 = arith.constant 2 : index
    %c0_7 = arith.constant 0 : index
    %c0_8 = arith.constant 0 : index
    %5 = vector.load %arg4[%c0_6, %c2, %c0_7, %c0_8] : memref<1x3x66x66xf32, #tpu.memory_space<vmem>>, vector<1x1x66x66xf32>
    %6 = vector.shape_cast %5 : vector<1x1x66x66xf32> to vector<66x66xf32>
    %c0_i32 = arith.constant 0 : i32
    %7 = arith.addi %0, %c0_i32 : i32
    %8 = arith.index_cast %7 : i32 to index
    %c0_9 = arith.constant 0 : index
    %9 = memref.load %arg2[%8, %c0_9] : memref<8x3xf32, #tpu.memory_space<smem>>
    %10 = vector.broadcast %9 : f32 to vector<66x66xf32>
    %11 = arith.mulf %2, %10 : vector<66x66xf32>
    %12 = arith.index_cast %7 : i32 to index
    %13 = memref.load %arg3[%12] : memref<8xf32, #tpu.memory_space<smem>>
    %14 = vector.broadcast %13 : f32 to vector<66x66xf32>
    %15 = arith.addf %11, %14 : vector<66x66xf32>
    %16 = arith.index_cast %7 : i32 to index
    %c1_10 = arith.constant 1 : index
    %17 = memref.load %arg2[%16, %c1_10] : memref<8x3xf32, #tpu.memory_space<smem>>
    %18 = vector.broadcast %17 : f32 to vector<66x66xf32>
    %19 = arith.mulf %4, %18 : vector<66x66xf32>
    %20 = arith.addf %15, %19 : vector<66x66xf32>
    %21 = arith.index_cast %7 : i32 to index
    %c2_11 = arith.constant 2 : index
    %22 = memref.load %arg2[%21, %c2_11] : memref<8x3xf32, #tpu.memory_space<smem>>
    %23 = vector.broadcast %22 : f32 to vector<66x66xf32>
    %24 = arith.mulf %6, %23 : vector<66x66xf32>
    %25 = arith.addf %20, %24 : vector<66x66xf32>
    %c0_12 = arith.constant 0 : index
    %c0_13 = arith.constant 0 : index
    %c0_14 = arith.constant 0 : index
    %c0_15 = arith.constant 0 : index
    %26 = vector.load %arg5[%c0_12, %c0_13, %c0_14, %c0_15] : memref<1x4x66x66xf32, #tpu.memory_space<vmem>>, vector<1x1x66x66xf32>
    %27 = vector.shape_cast %26 : vector<1x1x66x66xf32> to vector<66x66xf32>
    %28 = vector.shape_cast %25 : vector<66x66xf32> to vector<1x1x66x66xf32>
    tpu.vector_store %arg5[%c0_12, %c0_13, %c0_14, %c0_15], %28 {strides = array<i32>} : memref<1x4x66x66xf32, #tpu.memory_space<vmem>>, vector<1x1x66x66xf32>,
    %c1_i32 = arith.constant 1 : i32
    %29 = arith.addi %0, %c1_i32 : i32
    %30 = arith.index_cast %29 : i32 to index
    %c0_16 = arith.constant 0 : index
    %31 = memref.load %arg2[%30, %c0_16] : memref<8x3xf32, #tpu.memory_space<smem>>
    %32 = vector.broadcast %31 : f32 to vector<66x66xf32>
    %33 = arith.mulf %2, %32 : vector<66x66xf32>
    %34 = arith.index_cast %29 : i32 to index
    %35 = memref.load %arg3[%34] : memref<8xf32, #tpu.memory_space<smem>>
    %36 = vector.broadcast %35 : f32 to vector<66x66xf32>
    %37 = arith.addf %33, %36 : vector<66x66xf32>
    %38 = arith.index_cast %29 : i32 to index
    %c1_17 = arith.constant 1 : index
    %39 = memref.load %arg2[%38, %c1_17] : memref<8x3xf32, #tpu.memory_space<smem>>
    %40 = vector.broadcast %39 : f32 to vector<66x66xf32>
    %41 = arith.mulf %4, %40 : vector<66x66xf32>
    %42 = arith.addf %37, %41 : vector<66x66xf32>
    %43 = arith.index_cast %29 : i32 to index
    %c2_18 = arith.constant 2 : index
    %44 = memref.load %arg2[%43, %c2_18] : memref<8x3xf32, #tpu.memory_space<smem>>
    %45 = vector.broadcast %44 : f32 to vector<66x66xf32>
    %46 = arith.mulf %6, %45 : vector<66x66xf32>
    %47 = arith.addf %42, %46 : vector<66x66xf32>
    %c0_19 = arith.constant 0 : index
    %c1_20 = arith.constant 1 : index
    %c0_21 = arith.constant 0 : index
    %c0_22 = arith.constant 0 : index
    %48 = vector.load %arg5[%c0_19, %c1_20, %c0_21, %c0_22] : memref<1x4x66x66xf32, #tpu.memory_space<vmem>>, vector<1x1x66x66xf32>
    %49 = vector.shape_cast %48 : vector<1x1x66x66xf32> to vector<66x66xf32>
    %50 = vector.shape_cast %47 : vector<66x66xf32> to vector<1x1x66x66xf32>
    tpu.vector_store %arg5[%c0_19, %c1_20, %c0_21, %c0_22], %50 {strides = array<i32>} : memref<1x4x66x66xf32, #tpu.memory_space<vmem>>, vector<1x1x66x66xf32>,
    %c2_i32 = arith.constant 2 : i32
    %51 = arith.addi %0, %c2_i32 : i32
    %52 = arith.index_cast %51 : i32 to index
    %c0_23 = arith.constant 0 : index
    %53 = memref.load %arg2[%52, %c0_23] : memref<8x3xf32, #tpu.memory_space<smem>>
    %54 = vector.broadcast %53 : f32 to vector<66x66xf32>
    %55 = arith.mulf %2, %54 : vector<66x66xf32>
    %56 = arith.index_cast %51 : i32 to index
    %57 = memref.load %arg3[%56] : memref<8xf32, #tpu.memory_space<smem>>
    %58 = vector.broadcast %57 : f32 to vector<66x66xf32>
    %59 = arith.addf %55, %58 : vector<66x66xf32>
    %60 = arith.index_cast %51 : i32 to index
    %c1_24 = arith.constant 1 : index
    %61 = memref.load %arg2[%60, %c1_24] : memref<8x3xf32, #tpu.memory_space<smem>>
    %62 = vector.broadcast %61 : f32 to vector<66x66xf32>
    %63 = arith.mulf %4, %62 : vector<66x66xf32>
    %64 = arith.addf %59, %63 : vector<66x66xf32>
    %65 = arith.index_cast %51 : i32 to index
    %c2_25 = arith.constant 2 : index
    %66 = memref.load %arg2[%65, %c2_25] : memref<8x3xf32, #tpu.memory_space<smem>>
    %67 = vector.broadcast %66 : f32 to vector<66x66xf32>
    %68 = arith.mulf %6, %67 : vector<66x66xf32>
    %69 = arith.addf %64, %68 : vector<66x66xf32>
    %c0_26 = arith.constant 0 : index
    %c2_27 = arith.constant 2 : index
    %c0_28 = arith.constant 0 : index
    %c0_29 = arith.constant 0 : index
    %70 = vector.load %arg5[%c0_26, %c2_27, %c0_28, %c0_29] : memref<1x4x66x66xf32, #tpu.memory_space<vmem>>, vector<1x1x66x66xf32>
    %71 = vector.shape_cast %70 : vector<1x1x66x66xf32> to vector<66x66xf32>
    %72 = vector.shape_cast %69 : vector<66x66xf32> to vector<1x1x66x66xf32>
    tpu.vector_store %arg5[%c0_26, %c2_27, %c0_28, %c0_29], %72 {strides = array<i32>} : memref<1x4x66x66xf32, #tpu.memory_space<vmem>>, vector<1x1x66x66xf32>,
    %c3_i32 = arith.constant 3 : i32
    %73 = arith.addi %0, %c3_i32 : i32
    %74 = arith.index_cast %73 : i32 to index
    %c0_30 = arith.constant 0 : index
    %75 = memref.load %arg2[%74, %c0_30] : memref<8x3xf32, #tpu.memory_space<smem>>
    %76 = vector.broadcast %75 : f32 to vector<66x66xf32>
    %77 = arith.mulf %2, %76 : vector<66x66xf32>
    %78 = arith.index_cast %73 : i32 to index
    %79 = memref.load %arg3[%78] : memref<8xf32, #tpu.memory_space<smem>>
    %80 = vector.broadcast %79 : f32 to vector<66x66xf32>
    %81 = arith.addf %77, %80 : vector<66x66xf32>
    %82 = arith.index_cast %73 : i32 to index
    %c1_31 = arith.constant 1 : index
    %83 = memref.load %arg2[%82, %c1_31] : memref<8x3xf32, #tpu.memory_space<smem>>
    %84 = vector.broadcast %83 : f32 to vector<66x66xf32>
    %85 = arith.mulf %4, %84 : vector<66x66xf32>
    %86 = arith.addf %81, %85 : vector<66x66xf32>
    %87 = arith.index_cast %73 : i32 to index
    %c2_32 = arith.constant 2 : index
    %88 = memref.load %arg2[%87, %c2_32] : memref<8x3xf32, #tpu.memory_space<smem>>
    %89 = vector.broadcast %88 : f32 to vector<66x66xf32>
    %90 = arith.mulf %6, %89 : vector<66x66xf32>
    %91 = arith.addf %86, %90 : vector<66x66xf32>
    %c0_33 = arith.constant 0 : index
    %c3 = arith.constant 3 : index
    %c0_34 = arith.constant 0 : index
    %c0_35 = arith.constant 0 : index
    %92 = vector.load %arg5[%c0_33, %c3, %c0_34, %c0_35] : memref<1x4x66x66xf32, #tpu.memory_space<vmem>>, vector<1x1x66x66xf32>
    %93 = vector.shape_cast %92 : vector<1x1x66x66xf32> to vector<66x66xf32>
    %94 = vector.shape_cast %91 : vector<66x66xf32> to vector<1x1x66x66xf32>
    tpu.vector_store %arg5[%c0_33, %c3, %c0_34, %c0_35], %94 {strides = array<i32>} : memref<1x4x66x66xf32, #tpu.memory_space<vmem>>, vector<1x1x66x66xf32>,
    return
  }
  func.func @transform_0(%arg0: i32, %arg1: i32) -> (i32, i32) {
    %c0_i32 = arith.constant 0 : i32
    %c0_i32_0 = arith.constant 0 : i32
    %c0_i32_1 = arith.constant 0 : i32
    return %c0_i32, %c0_i32_0 : i32, i32
  }
  func.func @transform_1(%arg0: i32, %arg1: i32) -> i32 {
    %c0_i32 = arith.constant 0 : i32
    %c0_i32_0 = arith.constant 0 : i32
    return %c0_i32 : i32
  }
  func.func @transform_2(%arg0: i32, %arg1: i32) -> (i32, i32, i32, i32) {
    %c0_i32 = arith.constant 0 : i32
    %c0_i32_0 = arith.constant 0 : i32
    %c0_i32_1 = arith.constant 0 : i32
    %c0_i32_2 = arith.constant 0 : i32
    return %arg0, %c0_i32, %c0_i32_0, %c0_i32_1 : i32, i32, i32, i32
  }
  func.func @transform_3(%arg0: i32, %arg1: i32) -> (i32, i32, i32, i32) {
    %c0_i32 = arith.constant 0 : i32
    %c0_i32_0 = arith.constant 0 : i32
    %c0_i32_1 = arith.constant 0 : i32
    return %arg0, %arg1, %c0_i32, %c0_i32_0 : i32, i32, i32, i32
  }
}

</mosaic_0001>

<llo_original>
// kernel: model_forward.1
$region0: #{model_forward.1}
  #allocation0 [shape = 'u32[]', space=smem, size = 0x4, offset = 0x4, fixed_abs, tag = 'smem constant byte address 0x4 - core index']
  #allocation1 [shape = 'u32[144,128]{1,0:T(1,128)}', space=vmem, size = 0x12000, scoped, tag = 'internal scratch']
  %s0 = inlined_call_operand.vmem [shape: f32[8,3], index: 0, kind: input, shape index: {}]
  %s1 = inlined_call_operand.vmem [shape: f32[8], index: 1, kind: input, shape index: {}]
  %s2 = inlined_call_operand.vmem [shape: f32[1,3,66,66], index: 2, kind: input, shape index: {}]
  %s3 = inlined_call_operand.vmem [shape: f32[1,8,66,66], index: 3, kind: output, shape index: {}]
  %s4 = sld [smem:[#allocation0]]
  $region53: #{model_forward.1} parent=0
    _
  %s6 = ssub.s32 1, %s4
  %s7 = scalar_select 0, %s6, %s4
  $region1: #{model_forward.1} parent=0
    #allocation2 [shape = 'u8[4096]{0}', space=smem, size = 0x1000, scoped, tag = 'input window, operand 0, single buffered']
    #allocation3 [shape = 's32[2]{0}', space=sflag, size = 0x8, scoped, tag = 'scoped memory for model_forward.1']
    #allocation4 [shape = 'u8[512]{0}', space=smem, size = 0x200, scoped, tag = 'input window, operand 1, single buffered']
    #allocation5 [shape = 's32[1]{0}', space=sflag, size = 0x4, scoped, tag = 'scoped memory for model_forward.1']
    %8 = vsyncpa [#allocation3], 0
    %9 = vsyncpa [#allocation5], 0
    loop: start=0, step=1, limit=4
    $region2: #{model_forward.1} parent=1 // loop_pre_header
      _
    $region3: #{model_forward.1} parent=1 // loop_header
      %s11 = sphi 0, %s15
      %p12 = scmp.ge.s32.totalorder %s11, 4
      %s18 = sphi 0, %s30
      %s19 = sphi 0, %s26
      %s20 = sphi 0, %s18
      %s21 = sphi 0, %s19
      %s22 = sphi 0, %s20
      %s23 = sphi 0, %s21
      %s31 = sphi 0, %s31
      %s33 = sphi 0, %s31
      %s34 = sphi 0, %s33
      %s48 = sphi 0, %s34
      %s52 = sphi 0, %s52
      %s54 = sphi 0, %s52
      %s55 = sphi 0, %s54
      %s69 = sphi 0, %s55
      %s75 = sphi 0, %s77
      %s78 = sphi 0, %s75
      %s79 = sphi 0, %s78
      %s95 = sphi 0, %s79
      %s103 = sphi 0, %s105
      %s106 = sphi 0, %s103
      %s107 = sphi 0, %s106
      %s123 = sphi 0, %s107
    $region4: #{model_forward.1} parent=1 // loop_header_branch
      %14 = sbr.rel (%p12) target = $region8
    $region5: #{model_forward.1} parent=1 // loop_body
      %s16 = ssub.s32 %s11, 1
      %s17 = ssub.s32 %s11, 2
      %s24 = sadd.s32 1, %s19
      %p25 = scmp.ge.s32.totalorder %s24, 2
      %s26 = scalar_select %p25, 0, %s24
      %s27 = sadd.s32 1, %s18
      %s28 = scalar_select %p25, %s27, %s18
      %p29 = scmp.ge.s32.totalorder %s28, 1
      %s30 = scalar_select %p29, 0, %s28
      %s32 = sadd.s32 %s31, 1
      %p35 = scmp.eq.s32.totalorder %s11, 1
      %p36 = scmp.ne.s32.totalorder %s31, %s33
      %p37 = scmp.eq.s32.totalorder %s11, 0
      %p38 = por %p36, %p37
      %p39 = scmp.ne.s32.totalorder %s31, %s33
      %p40 = scmp.eq.s32.totalorder %s16, 1
      %p41 = por %p39, %p40
      %p42 = scmp.ne.s32.totalorder %s33, %s34
      %p43 = scmp.eq.s32.totalorder %s16, 0
      %p44 = por %p42, %p43
      %p45 = scmp.ne.s32.totalorder %s33, %s34
      %p46 = scmp.eq.s32.totalorder %s17, 1
      %p47 = por %p45, %p46
      %p49 = scmp.ne.s32.totalorder %s34, %s48
      %p50 = scmp.eq.s32.totalorder %s17, 0
      %p51 = por %p49, %p50
      %s53 = sadd.s32 %s52, 1
      %p56 = scmp.eq.s32.totalorder %s11, 1
      %p57 = scmp.ne.s32.totalorder %s52, %s54
      %p58 = scmp.eq.s32.totalorder %s11, 0
      %p59 = por %p57, %p58
      %p60 = scmp.ne.s32.totalorder %s52, %s54
      %p61 = scmp.eq.s32.totalorder %s16, 1
      %p62 = por %p60, %p61
      %p63 = scmp.ne.s32.totalorder %s54, %s55
      %p64 = scmp.eq.s32.totalorder %s16, 0
      %p65 = por %p63, %p64
      %p66 = scmp.ne.s32.totalorder %s54, %s55
      %p67 = scmp.eq.s32.totalorder %s17, 1
      %p68 = por %p66, %p67
      %p70 = scmp.ne.s32.totalorder %s55, %s69
      %p71 = scmp.eq.s32.totalorder %s17, 0
      %p72 = por %p70, %p71
      %s73 = ssub.s32 %s18, %s30
      %p74 = scmp.eq.s32.totalorder %s73, 0
      %s76 = sadd.s32 %s75, 1
      %s77 = scalar_select %p74, %s75, %s76
      %p80 = pneg %p74
      %p81 = scmp.eq.s32.totalorder %s11, 1
      %p82 = por %p80, %p81
      %p83 = scmp.ne.s32.totalorder %s75, %s78
      %p84 = scmp.eq.s32.totalorder %s11, 0
      %p85 = por %p83, %p84
      %p86 = scmp.ne.s32.totalorder %s75, %s78
      %p87 = scmp.eq.s32.totalorder %s16, 1
      %p88 = por %p86, %p87
      %p89 = scmp.ne.s32.totalorder %s78, %s79
      %p90 = scmp.eq.s32.totalorder %s16, 0
      %p91 = por %p89, %p90
      %p92 = scmp.ne.s32.totalorder %s78, %s79
      %p93 = scmp.eq.s32.totalorder %s17, 1
      %p94 = por %p92, %p93
      %p96 = scmp.ne.s32.totalorder %s79, %s95
      %p97 = scmp.eq.s32.totalorder %s17, 0
      %p98 = por %p96, %p97
      %s99 = ssub.s32 %s18, %s30
      %s100 = ssub.s32 %s19, %s26
      %s101 = sor.u32 %s99, %s100
      %p102 = scmp.eq.s32.totalorder %s101, 0
      %s104 = sadd.s32 %s103, 1
      %s105 = scalar_select %p102, %s103, %s104
      %p108 = pneg %p102
      %p109 = scmp.eq.s32.totalorder %s11, 1
      %p110 = por %p108, %p109
      %p111 = scmp.ne.s32.totalorder %s103, %s106
      %p112 = scmp.eq.s32.totalorder %s11, 0
      %p113 = por %p111, %p112
      %p114 = scmp.ne.s32.totalorder %s103, %s106
      %p115 = scmp.eq.s32.totalorder %s16, 1
      %p116 = por %p114, %p115
      %p117 = scmp.ne.s32.totalorder %s106, %s107
      %p118 = scmp.eq.s32.totalorder %s16, 0
      %p119 = por %p117, %p118
      %p120 = scmp.ne.s32.totalorder %s106, %s107
      %p121 = scmp.eq.s32.totalorder %s17, 1
      %p122 = por %p120, %p121
      %p124 = scmp.ne.s32.totalorder %s107, %s123
      %p125 = scmp.eq.s32.totalorder %s17, 0
      %p126 = por %p124, %p125
      %p127 = scmp.le.s32.totalorder 1, %s11
      %p128 = scmp.lt.s32.totalorder %s11, 3
      %p129 = pnand %p127, %p128
      %p130 = pneg %p129
      // Predicated region
      $region9: #{model_forward.1} parent=5 // pred_check
        _
      $region10: #{model_forward.1} parent=5 // pred_check_branch
        %132 = sbr.rel (%p129) target = $region12
      $region11: #{model_forward.1} parent=5 // pred_region
        %s133 = ssub.s32 %s11, 1
        // Predicated region
        $region13: #{model_forward.1} parent=11 // pred_check
          %p134 = pneg %p44
        $region14: #{model_forward.1} parent=11 // pred_check_branch
          %136 = sbr.rel (%p134) target = $region16
        $region15: #{model_forward.1} parent=11 // pred_region
          %s138 = ssub.s32 128, 128
          %139 = vsyncadd [#allocation3], %s138
          %s141 = sshll.u32 %s0, 4
          %s142 = int_to_ptr.vmem [resolvable:$true] %s141
          %144 = dma.vmem_to_smem %s142, 128, [#allocation2], [#allocation3]
        $region16: #{model_forward.1} parent=11 // pred_fallthru
          _
        // Predicated region
        $region17: #{model_forward.1} parent=11 // pred_check
          %p145 = pneg %p65
        $region18: #{model_forward.1} parent=11 // pred_check_branch
          %147 = sbr.rel (%p145) target = $region20
        $region19: #{model_forward.1} parent=11 // pred_region
          %s149 = ssub.s32 16, 16
          %150 = vsyncadd [#allocation5], %s149
          %s152 = sshll.u32 %s1, 4
          %s153 = int_to_ptr.vmem [resolvable:$true] %s152
          %155 = dma.vmem_to_smem %s153, 16, [#allocation4], [#allocation5]
        $region20: #{model_forward.1} parent=11 // pred_fallthru
          _
        // Predicated region
        $region21: #{model_forward.1} parent=11 // pred_check
          %p156 = pneg %p91
        $region22: #{model_forward.1} parent=11 // pred_check_branch
          %158 = sbr.rel (%p156) target = $region24
        $region23: #{model_forward.1} parent=11 // pred_region
          %p159 = scmp.lt.s32.totalorder %s20, 0
          %s160 = scalar_select %p159, %s20, 0
          %s161 = smul.addr %s160, 27
          %s162 = smul.addr %s161, 8
          %s163 = scalar_lea.vmem %s2, %s162
        $region24: #{model_forward.1} parent=11 // pred_fallthru
          _
      $region12: #{model_forward.1} parent=5 // pred_fallthru
        _
      %p164 = scmp.lt.s32.totalorder %s11, 2
      // Predicated region
      $region25: #{model_forward.1} parent=5 // pred_check
        %p165 = pneg %p164
      $region26: #{model_forward.1} parent=5 // pred_check_branch
        %167 = sbr.rel (%p165) target = $region28
      $region27: #{model_forward.1} parent=5 // pred_region
        _
      $region28: #{model_forward.1} parent=5 // pred_fallthru
        _
      %p168 = scmp.le.s32.totalorder 1, %s11
      %p169 = scmp.lt.s32.totalorder %s11, 3
      %p170 = pnand %p168, %p169
      %p171 = pneg %p170
      // Predicated region
      $region29: #{model_forward.1} parent=5 // pred_check
        _
      $region30: #{model_forward.1} parent=5 // pred_check_branch
        %173 = sbr.rel (%p170) target = $region32
      $region31: #{model_forward.1} parent=5 // pred_region
        %s174 = ssub.s32 %s11, 1
        // Predicated region
        $region33: #{model_forward.1} parent=31 // pred_check
          %p175 = pneg %p44
        $region34: #{model_forward.1} parent=31 // pred_check_branch
          %177 = sbr.rel (%p175) target = $region36
        $region35: #{model_forward.1} parent=31 // pred_region
          %178 = dma.done [#allocation3], 128
        $region36: #{model_forward.1} parent=31 // pred_fallthru
          _
        // Predicated region
        $region37: #{model_forward.1} parent=31 // pred_check
          %p179 = pneg %p65
        $region38: #{model_forward.1} parent=31 // pred_check_branch
          %181 = sbr.rel (%p179) target = $region40
        $region39: #{model_forward.1} parent=31 // pred_region
          %182 = dma.done [#allocation5], 16
        $region40: #{model_forward.1} parent=31 // pred_fallthru
          _
        %183 = sfence
        %p184 = pneg %p44
        %p185 = pneg %p41
        %p186 = pneg %p65
        %p187 = pneg %p62
        %p188 = scmp.lt.s32.totalorder %s20, 0
        %s189 = scalar_select %p188, %s20, 0
        %s190 = smul.addr %s189, 27
        %s191 = smul.addr %s190, 8
        %s192 = scalar_lea.vmem %s2, %s191
        %p193 = pneg %p91
        %p194 = pneg %p88
        %p195 = pneg %p119
        %p196 = pneg %p116
        %s197 = smul.u32 4, %s21
        %p198 = scmp.lt.s32.totalorder %s20, 0
        %s199 = scalar_select %p198, %s20, 0
        %p200 = scmp.lt.s32.totalorder %s197, 7
        %s201 = scalar_select %p200, %s197, 7
        %s202 = smul.addr %s201, 9
        %s203 = smul.addr %s199, 72
        %s204 = sadd.s32 %s202, %s203
        %s205 = smul.addr %s204, 8
        %s206 = scalar_lea.vmem %s3, %s205
        %p207 = scmp.lt.s32.totalorder %s20, 0
        %s208 = scalar_select %p207, %s20, 0
        %s209 = smul.addr %s208, 27
        %s210 = smul.addr %s209, 8
        %s211 = scalar_lea.vmem %s2, %s210
        %s212 = smul.u32 4, %s21
        %p213 = scmp.lt.s32.totalorder %s20, 0
        %s214 = scalar_select %p213, %s20, 0
        %p215 = scmp.lt.s32.totalorder %s212, 7
        %s216 = scalar_select %p215, %s212, 7
        %s217 = smul.addr %s216, 9
        %s218 = smul.addr %s214, 72
        %s219 = sadd.s32 %s217, %s218
        %s220 = smul.addr %s219, 8
        %s221 = scalar_lea.vmem %s3, %s220
        %s222 = smul.u32 4, %s21
        %s223 = smul.u32 %s21, 4
        %v224 = vld [vmem:[%s211] sm:$0xff]
        %v225 = vld [vmem:[%s211 + $0x8] sm:$0xff]
        %v226 = vld [vmem:[%s211 + $0x10] sm:$0xff]
        %v227 = vld [vmem:[%s211 + $0x18] sm:$0xff]
        %v228 = vld [vmem:[%s211 + $0x20] sm:$0xff]
        %v229 = vld [vmem:[%s211 + $0x28] sm:$0xff]
        %v230 = vld [vmem:[%s211 + $0x30] sm:$0xff]
        %v231 = vld [vmem:[%s211 + $0x38] sm:$0xff]
        %v232 = vld [vmem:[%s211 + $0x40] sm:$0x3]
        %s233 = scalar_lea.vmem %s211, 72
        %v234 = vld [vmem:[%s233] sm:$0xff]
        %v235 = vld [vmem:[%s233 + $0x8] sm:$0xff]
        %v236 = vld [vmem:[%s233 + $0x10] sm:$0xff]
        %v237 = vld [vmem:[%s233 + $0x18] sm:$0xff]
        %v238 = vld [vmem:[%s233 + $0x20] sm:$0xff]
        %v239 = vld [vmem:[%s233 + $0x28] sm:$0xff]
        %v240 = vld [vmem:[%s233 + $0x30] sm:$0xff]
        %v241 = vld [vmem:[%s233 + $0x38] sm:$0xff]
        %v242 = vld [vmem:[%s233 + $0x40] sm:$0x3]
        %s243 = scalar_lea.vmem %s211, 144
        %v244 = vld [vmem:[%s243] sm:$0xff]
        %v245 = vld [vmem:[%s243 + $0x8] sm:$0xff]
        %v246 = vld [vmem:[%s243 + $0x10] sm:$0xff]
        %v247 = vld [vmem:[%s243 + $0x18] sm:$0xff]
        %v248 = vld [vmem:[%s243 + $0x20] sm:$0xff]
        %v249 = vld [vmem:[%s243 + $0x28] sm:$0xff]
        %v250 = vld [vmem:[%s243 + $0x30] sm:$0xff]
        %v251 = vld [vmem:[%s243 + $0x38] sm:$0xff]
        %v252 = vld [vmem:[%s243 + $0x40] sm:$0x3]
        %s253 = smul.u32 %s223, 128
        %s254 = sld [smem:[#allocation2 + %s253]]
        %v255 = vstv %s254
        %v256 = vmul.f32 %v224, %v255
        %v257 = vmul.f32 %v225, %v255
        %v258 = vmul.f32 %v226, %v255
        %v259 = vmul.f32 %v227, %v255
        %v260 = vmul.f32 %v228, %v255
        %v261 = vmul.f32 %v229, %v255
        %v262 = vmul.f32 %v230, %v255
        %v263 = vmul.f32 %v231, %v255
        %v264 = vmul.f32 %v232, %v255
        %s265 = sld [smem:[#allocation4 + %s223]]
        %v266 = vstv %s265
        %v267 = vadd.f32 %v256, %v266
        %v268 = vadd.f32 %v257, %v266
        %v269 = vadd.f32 %v258, %v266
        %v270 = vadd.f32 %v259, %v266
        %v271 = vadd.f32 %v260, %v266
        %v272 = vadd.f32 %v261, %v266
        %v273 = vadd.f32 %v262, %v266
        %v274 = vadd.f32 %v263, %v266
        %v275 = vadd.f32 %v264, %v266
        %s276 = sadd.s32 %s253, 1
        %s277 = sld [smem:[#allocation2 + %s276]]
        %v278 = vstv %s277
        %v279 = vmul.f32 %v234, %v278
        %v280 = vmul.f32 %v235, %v278
        %v281 = vmul.f32 %v236, %v278
        %v282 = vmul.f32 %v237, %v278
        %v283 = vmul.f32 %v238, %v278
        %v284 = vmul.f32 %v239, %v278
        %v285 = vmul.f32 %v240, %v278
        %v286 = vmul.f32 %v241, %v278
        %v287 = vmul.f32 %v242, %v278
        %v288 = vadd.f32 %v267, %v279
        %v289 = vadd.f32 %v268, %v280
        %v290 = vadd.f32 %v269, %v281
        %v291 = vadd.f32 %v270, %v282
        %v292 = vadd.f32 %v271, %v283
        %v293 = vadd.f32 %v272, %v284
        %v294 = vadd.f32 %v273, %v285
        %v295 = vadd.f32 %v274, %v286
        %v296 = vadd.f32 %v275, %v287
        %s297 = sadd.s32 %s253, 2
        %s298 = sld [smem:[#allocation2 + %s297]]
        %v299 = vstv %s298
        %v300 = vmul.f32 %v244, %v299
        %v301 = vmul.f32 %v245, %v299
        %v302 = vmul.f32 %v246, %v299
        %v303 = vmul.f32 %v247, %v299
        %v304 = vmul.f32 %v248, %v299
        %v305 = vmul.f32 %v249, %v299
        %v306 = vmul.f32 %v250, %v299
        %v307 = vmul.f32 %v251, %v299
        %v308 = vmul.f32 %v252, %v299
        %v309 = vadd.f32 %v288, %v300
        %v310 = vadd.f32 %v289, %v301
        %v311 = vadd.f32 %v290, %v302
        %v312 = vadd.f32 %v291, %v303
        %v313 = vadd.f32 %v292, %v304
        %v314 = vadd.f32 %v293, %v305
        %v315 = vadd.f32 %v294, %v306
        %v316 = vadd.f32 %v295, %v307
        %v317 = vadd.f32 %v296, %v308
        %vm318 = vcmask 539648
        %319 = vst.msk [vmem:[%s221] sm:$0xff] %vm318, %v309
        %320 = vst.msk [vmem:[%s221 + $0x8] sm:$0xff] %vm318, %v310
        %321 = vst.msk [vmem:[%s221 + $0x10] sm:$0xff] %vm318, %v311
        %322 = vst.msk [vmem:[%s221 + $0x18] sm:$0xff] %vm318, %v312
        %323 = vst.msk [vmem:[%s221 + $0x20] sm:$0xff] %vm318, %v313
        %324 = vst.msk [vmem:[%s221 + $0x28] sm:$0xff] %vm318, %v314
        %325 = vst.msk [vmem:[%s221 + $0x30] sm:$0xff] %vm318, %v315
        %326 = vst.msk [vmem:[%s221 + $0x38] sm:$0xff] %vm318, %v316
        %vm327 = vcmask 533504
        %328 = vst.msk [vmem:[%s221 + $0x40] sm:$0x3] %vm327, %v317
        %s329 = sadd.s32 %s223, 1
        %s330 = smul.u32 %s329, 128
        %s331 = sld [smem:[#allocation2 + %s330]]
        %v332 = vstv %s331
        %v333 = vmul.f32 %v224, %v332
        %v334 = vmul.f32 %v225, %v332
        %v335 = vmul.f32 %v226, %v332
        %v336 = vmul.f32 %v227, %v332
        %v337 = vmul.f32 %v228, %v332
        %v338 = vmul.f32 %v229, %v332
        %v339 = vmul.f32 %v230, %v332
        %v340 = vmul.f32 %v231, %v332
        %v341 = vmul.f32 %v232, %v332
        %s342 = sld [smem:[#allocation4 + %s329]]
        %v343 = vstv %s342
        %v344 = vadd.f32 %v333, %v343
        %v345 = vadd.f32 %v334, %v343
        %v346 = vadd.f32 %v335, %v343
        %v347 = vadd.f32 %v336, %v343
        %v348 = vadd.f32 %v337, %v343
        %v349 = vadd.f32 %v338, %v343
        %v350 = vadd.f32 %v339, %v343
        %v351 = vadd.f32 %v340, %v343
        %v352 = vadd.f32 %v341, %v343
        %s353 = sadd.s32 %s330, 1
        %s354 = sld [smem:[#allocation2 + %s353]]
        %v355 = vstv %s354
        %v356 = vmul.f32 %v234, %v355
        %v357 = vmul.f32 %v235, %v355
        %v358 = vmul.f32 %v236, %v355
        %v359 = vmul.f32 %v237, %v355
        %v360 = vmul.f32 %v238, %v355
        %v361 = vmul.f32 %v239, %v355
        %v362 = vmul.f32 %v240, %v355
        %v363 = vmul.f32 %v241, %v355
        %v364 = vmul.f32 %v242, %v355
        %v365 = vadd.f32 %v344, %v356
        %v366 = vadd.f32 %v345, %v357
        %v367 = vadd.f32 %v346, %v358
        %v368 = vadd.f32 %v347, %v359
        %v369 = vadd.f32 %v348, %v360
        %v370 = vadd.f32 %v349, %v361
        %v371 = vadd.f32 %v350, %v362
        %v372 = vadd.f32 %v351, %v363
        %v373 = vadd.f32 %v352, %v364
        %s374 = sadd.s32 %s330, 2
        %s375 = sld [smem:[#allocation2 + %s374]]
        %v376 = vstv %s375
        %v377 = vmul.f32 %v244, %v376
        %v378 = vmul.f32 %v245, %v376
        %v379 = vmul.f32 %v246, %v376
        %v380 = vmul.f32 %v247, %v376
        %v381 = vmul.f32 %v248, %v376
        %v382 = vmul.f32 %v249, %v376
        %v383 = vmul.f32 %v250, %v376
        %v384 = vmul.f32 %v251, %v376
        %v385 = vmul.f32 %v252, %v376
        %v386 = vadd.f32 %v365, %v377
        %v387 = vadd.f32 %v366, %v378
        %v388 = vadd.f32 %v367, %v379
        %v389 = vadd.f32 %v368, %v380
        %v390 = vadd.f32 %v369, %v381
        %v391 = vadd.f32 %v370, %v382
        %v392 = vadd.f32 %v371, %v383
        %v393 = vadd.f32 %v372, %v384
        %v394 = vadd.f32 %v373, %v385
        %s395 = scalar_lea.vmem %s221, 72
        %396 = vst.msk [vmem:[%s395] sm:$0xff] %vm318, %v386
        %397 = vst.msk [vmem:[%s395 + $0x8] sm:$0xff] %vm318, %v387
        %398 = vst.msk [vmem:[%s395 + $0x10] sm:$0xff] %vm318, %v388
        %399 = vst.msk [vmem:[%s395 + $0x18] sm:$0xff] %vm318, %v389
        %400 = vst.msk [vmem:[%s395 + $0x20] sm:$0xff] %vm318, %v390
        %401 = vst.msk [vmem:[%s395 + $0x28] sm:$0xff] %vm318, %v391
        %402 = vst.msk [vmem:[%s395 + $0x30] sm:$0xff] %vm318, %v392
        %403 = vst.msk [vmem:[%s395 + $0x38] sm:$0xff] %vm318, %v393
        %404 = vst.msk [vmem:[%s395 + $0x40] sm:$0x3] %vm327, %v394
        %s405 = sadd.s32 %s223, 2
        %s406 = smul.u32 %s405, 128
        %s407 = sld [smem:[#allocation2 + %s406]]
        %v408 = vstv %s407
        %v409 = vmul.f32 %v224, %v408
        %v410 = vmul.f32 %v225, %v408
        %v411 = vmul.f32 %v226, %v408
        %v412 = vmul.f32 %v227, %v408
        %v413 = vmul.f32 %v228, %v408
        %v414 = vmul.f32 %v229, %v408
        %v415 = vmul.f32 %v230, %v408
        %v416 = vmul.f32 %v231, %v408
        %v417 = vmul.f32 %v232, %v408
        %s418 = sld [smem:[#allocation4 + %s405]]
        %v419 = vstv %s418
        %v420 = vadd.f32 %v409, %v419
        %v421 = vadd.f32 %v410, %v419
        %v422 = vadd.f32 %v411, %v419
        %v423 = vadd.f32 %v412, %v419
        %v424 = vadd.f32 %v413, %v419
        %v425 = vadd.f32 %v414, %v419
        %v426 = vadd.f32 %v415, %v419
        %v427 = vadd.f32 %v416, %v419
        %v428 = vadd.f32 %v417, %v419
        %s429 = sadd.s32 %s406, 1
        %s430 = sld [smem:[#allocation2 + %s429]]
        %v431 = vstv %s430
        %v432 = vmul.f32 %v234, %v431
        %v433 = vmul.f32 %v235, %v431
        %v434 = vmul.f32 %v236, %v431
        %v435 = vmul.f32 %v237, %v431
        %v436 = vmul.f32 %v238, %v431
        %v437 = vmul.f32 %v239, %v431
        %v438 = vmul.f32 %v240, %v431
        %v439 = vmul.f32 %v241, %v431
        %v440 = vmul.f32 %v242, %v431
        %v441 = vadd.f32 %v420, %v432
        %v442 = vadd.f32 %v421, %v433
        %v443 = vadd.f32 %v422, %v434
        %v444 = vadd.f32 %v423, %v435
        %v445 = vadd.f32 %v424, %v436
        %v446 = vadd.f32 %v425, %v437
        %v447 = vadd.f32 %v426, %v438
        %v448 = vadd.f32 %v427, %v439
        %v449 = vadd.f32 %v428, %v440
        %s450 = sadd.s32 %s406, 2
        %s451 = sld [smem:[#allocation2 + %s450]]
        %v452 = vstv %s451
        %v453 = vmul.f32 %v244, %v452
        %v454 = vmul.f32 %v245, %v452
        %v455 = vmul.f32 %v246, %v452
        %v456 = vmul.f32 %v247, %v452
        %v457 = vmul.f32 %v248, %v452
        %v458 = vmul.f32 %v249, %v452
        %v459 = vmul.f32 %v250, %v452
        %v460 = vmul.f32 %v251, %v452
        %v461 = vmul.f32 %v252, %v452
        %v462 = vadd.f32 %v441, %v453
        %v463 = vadd.f32 %v442, %v454
        %v464 = vadd.f32 %v443, %v455
        %v465 = vadd.f32 %v444, %v456
        %v466 = vadd.f32 %v445, %v457
        %v467 = vadd.f32 %v446, %v458
        %v468 = vadd.f32 %v447, %v459
        %v469 = vadd.f32 %v448, %v460
        %v470 = vadd.f32 %v449, %v461
        %s471 = scalar_lea.vmem %s221, 144
        %472 = vst.msk [vmem:[%s471] sm:$0xff] %vm318, %v462
        %473 = vst.msk [vmem:[%s471 + $0x8] sm:$0xff] %vm318, %v463
        %474 = vst.msk [vmem:[%s471 + $0x10] sm:$0xff] %vm318, %v464
        %475 = vst.msk [vmem:[%s471 + $0x18] sm:$0xff] %vm318, %v465
        %476 = vst.msk [vmem:[%s471 + $0x20] sm:$0xff] %vm318, %v466
        %477 = vst.msk [vmem:[%s471 + $0x28] sm:$0xff] %vm318, %v467
        %478 = vst.msk [vmem:[%s471 + $0x30] sm:$0xff] %vm318, %v468
        %479 = vst.msk [vmem:[%s471 + $0x38] sm:$0xff] %vm318, %v469
        %480 = vst.msk [vmem:[%s471 + $0x40] sm:$0x3] %vm327, %v470
        %s481 = sadd.s32 %s223, 3
        %s482 = smul.u32 %s481, 128
        %s483 = sld [smem:[#allocation2 + %s482]]
        %v484 = vstv %s483
        %v485 = vmul.f32 %v224, %v484
        %v486 = vmul.f32 %v225, %v484
        %v487 = vmul.f32 %v226, %v484
        %v488 = vmul.f32 %v227, %v484
        %v489 = vmul.f32 %v228, %v484
        %v490 = vmul.f32 %v229, %v484
        %v491 = vmul.f32 %v230, %v484
        %v492 = vmul.f32 %v231, %v484
        %v493 = vmul.f32 %v232, %v484
        %s494 = sld [smem:[#allocation4 + %s481]]
        %v495 = vstv %s494
        %v496 = vadd.f32 %v485, %v495
        %v497 = vadd.f32 %v486, %v495
        %v498 = vadd.f32 %v487, %v495
        %v499 = vadd.f32 %v488, %v495
        %v500 = vadd.f32 %v489, %v495
        %v501 = vadd.f32 %v490, %v495
        %v502 = vadd.f32 %v491, %v495
        %v503 = vadd.f32 %v492, %v495
        %v504 = vadd.f32 %v493, %v495
        %s505 = sadd.s32 %s482, 1
        %s506 = sld [smem:[#allocation2 + %s505]]
        %v507 = vstv %s506
        %v508 = vmul.f32 %v234, %v507
        %v509 = vmul.f32 %v235, %v507
        %v510 = vmul.f32 %v236, %v507
        %v511 = vmul.f32 %v237, %v507
        %v512 = vmul.f32 %v238, %v507
        %v513 = vmul.f32 %v239, %v507
        %v514 = vmul.f32 %v240, %v507
        %v515 = vmul.f32 %v241, %v507
        %v516 = vmul.f32 %v242, %v507
        %v517 = vadd.f32 %v496, %v508
        %v518 = vadd.f32 %v497, %v509
        %v519 = vadd.f32 %v498, %v510
        %v520 = vadd.f32 %v499, %v511
        %v521 = vadd.f32 %v500, %v512
        %v522 = vadd.f32 %v501, %v513
        %v523 = vadd.f32 %v502, %v514
        %v524 = vadd.f32 %v503, %v515
        %v525 = vadd.f32 %v504, %v516
        %s526 = sadd.s32 %s482, 2
        %s527 = sld [smem:[#allocation2 + %s526]]
        %v528 = vstv %s527
        %v529 = vmul.f32 %v244, %v528
        %v530 = vmul.f32 %v245, %v528
        %v531 = vmul.f32 %v246, %v528
        %v532 = vmul.f32 %v247, %v528
        %v533 = vmul.f32 %v248, %v528
        %v534 = vmul.f32 %v249, %v528
        %v535 = vmul.f32 %v250, %v528
        %v536 = vmul.f32 %v251, %v528
        %v537 = vmul.f32 %v252, %v528
        %v538 = vadd.f32 %v517, %v529
        %v539 = vadd.f32 %v518, %v530
        %v540 = vadd.f32 %v519, %v531
        %v541 = vadd.f32 %v520, %v532
        %v542 = vadd.f32 %v521, %v533
        %v543 = vadd.f32 %v522, %v534
        %v544 = vadd.f32 %v523, %v535
        %v545 = vadd.f32 %v524, %v536
        %v546 = vadd.f32 %v525, %v537
        %s547 = scalar_lea.vmem %s221, 216
        %548 = vst.msk [vmem:[%s547] sm:$0xff] %vm318, %v538
        %549 = vst.msk [vmem:[%s547 + $0x8] sm:$0xff] %vm318, %v539
        %550 = vst.msk [vmem:[%s547 + $0x10] sm:$0xff] %vm318, %v540
        %551 = vst.msk [vmem:[%s547 + $0x18] sm:$0xff] %vm318, %v541
        %552 = vst.msk [vmem:[%s547 + $0x20] sm:$0xff] %vm318, %v542
        %553 = vst.msk [vmem:[%s547 + $0x28] sm:$0xff] %vm318, %v543
        %554 = vst.msk [vmem:[%s547 + $0x30] sm:$0xff] %vm318, %v544
        %555 = vst.msk [vmem:[%s547 + $0x38] sm:$0xff] %vm318, %v545
        %556 = vst.msk [vmem:[%s547 + $0x40] sm:$0x3] %vm327, %v546
        %s557 = smul.u32 4, %s21
        %p558 = scmp.lt.s32.totalorder %s20, 0
        %s559 = scalar_select %p558, %s20, 0
        %p560 = scmp.lt.s32.totalorder %s557, 7
        %s561 = scalar_select %p560, %s557, 7
        %s562 = smul.addr %s561, 9
        %s563 = smul.addr %s559, 72
        %s564 = sadd.s32 %s562, %s563
        %s565 = smul.addr %s564, 8
        %s566 = scalar_lea.vmem %s3, %s565
        // Predicated region
        $region41: #{model_forward.1} parent=31 // pred_check
          %p567 = pneg %p116
        $region42: #{model_forward.1} parent=31 // pred_check_branch
          %569 = sbr.rel (%p567) target = $region44
        $region43: #{model_forward.1} parent=31 // pred_region
          %s570 = smul.u32 4, %s21
        $region44: #{model_forward.1} parent=31 // pred_fallthru
          _
      $region32: #{model_forward.1} parent=5 // pred_fallthru
        _
      %p571 = scmp.le.s32.totalorder 2, %s11
      // Predicated region
      $region45: #{model_forward.1} parent=5 // pred_check
        %p572 = pneg %p571
      $region46: #{model_forward.1} parent=5 // pred_check_branch
        %574 = sbr.rel (%p572) target = $region48
      $region47: #{model_forward.1} parent=5 // pred_region
        %s575 = ssub.s32 %s11, 2
        // Predicated region
        $region49: #{model_forward.1} parent=47 // pred_check
          %p576 = pneg %p122
        $region50: #{model_forward.1} parent=47 // pred_check_branch
          %578 = sbr.rel (%p576) target = $region52
        $region51: #{model_forward.1} parent=47 // pred_region
          %s579 = smul.u32 4, %s23
          %p580 = scmp.lt.s32.totalorder %s22, 0
          %s581 = scalar_select %p580, %s22, 0
          %p582 = scmp.lt.s32.totalorder %s579, 7
          %s583 = scalar_select %p582, %s579, 7
          %s584 = smul.addr %s583, 9
          %s585 = smul.addr %s581, 72
          %s586 = sadd.s32 %s584, %s585
          %s587 = smul.addr %s586, 8
          %s588 = scalar_lea.vmem %s3, %s587
        $region52: #{model_forward.1} parent=47 // pred_fallthru
          _
      $region48: #{model_forward.1} parent=5 // pred_fallthru
        _
    $region6: #{model_forward.1} parent=1 // loop_footer
      %s15 = sadd.s32 1, %s11
    $region7: #{model_forward.1} parent=1 // loop_footer_branch
      %10 = sbr.rel target = $region3
    $region8: #{model_forward.1} parent=1 // loop_exit
      _
    %589 = vsyncpa [#allocation3], 1
    %s590 = scalar_lea.sflag [#allocation3], 1
    %591 = vsyncpa %s590, 1
    %592 = vsyncpa [#allocation5], 1

</llo_original>
